<compile_context>
chip_gen: v6e
topology: v6e:2x2x1
jax: 0.10.0
libtpu: 0.0.40
codegen_flags: <defaults>
</compile_context>

<pallas_src>
import functools
import math

import jax
import jax.numpy as jnp
from jax.experimental import pallas as pl
from jax.experimental.pallas import tpu as pltpu


# ----------------------------------------------------------------------------
# Kernel 1: softmax + one-hot fg + negated sort key + per-block fg totals
# ----------------------------------------------------------------------------
def _softmax_key_kernel(logits_ref, labels_ref, key_ref, fg_ref, part_ref):
    x = logits_ref[...]                                    # (C, Pb1) f32
    C, Pb = x.shape

    m = jnp.max(x, axis=0, keepdims=True)                  # (1, Pb1) sublane reduce
    e = jnp.exp(x - m)
    denom = jnp.sum(e, axis=0, keepdims=True)              # (1, Pb1)
    probas = e * pl.reciprocal(denom, approx=False)        # softmax over classes

    labels = labels_ref[...]                               # (1, Pb1) int32 (-1 = pad)
    c_iota = jax.lax.broadcasted_iota(jnp.int32, (C, Pb), 0)
    fg = (labels == c_iota).astype(jnp.float32)            # one-hot labels (C, Pb1)
    valid = (labels >= 0).astype(jnp.float32)              # (1, Pb1) padding mask

    # Negated key: ascending lax.sort == descending-by-error, and the two
    # host-side negation passes over the (C, P) array disappear.
    key_ref[...] = -(jnp.abs(fg - probas) * valid)
    fg_ref[...] = fg.astype(jnp.bfloat16)                  # 0/1 exact in bf16

    # Per-block fg totals, written into lane 0 of a 128-lane stripe; a tiny
    # host-side sum turns them into gts without re-reading fg from HBM.
    blocksum = jnp.sum(fg, axis=1, keepdims=True)          # (C, 1)
    lane = jax.lax.broadcasted_iota(jnp.int32, part_ref.shape, 1)
    part_ref[...] = jnp.where(lane == 0, blocksum, 0.0)


# ----------------------------------------------------------------------------
# Kernel 2: blocked Lovasz-gradient scan + per-class dot + mean
#   Inputs are sorted ascending by (negated) key per class along the lane axis,
#   i.e. descending by error.
# ----------------------------------------------------------------------------
def _lovasz_scan_kernel(flags_ref, key_ref, fg_ref, gts_ref, out_ref,
                        cum_carry_ref, jac_carry_ref):
    k = pl.program_id(0)
    C, Pb = key_ref.shape

    @pl.when(k == 0)
    def _():
        out_ref[...] = jnp.zeros_like(out_ref)
        cum_carry_ref[...] = jnp.zeros_like(cum_carry_ref)
        jac_carry_ref[...] = jnp.zeros_like(jac_carry_ref)

    # A block whose largest remaining error (for every class) is exactly 0
    # contributes nothing, and neither does anything after it in the sorted
    # stream, so its whole body (and the carry updates) can be skipped.
    @pl.when(flags_ref[k] != 0)
    def _():
        key = key_ref[...]                                 # (C, Pb) f32, key = -err
        fg = fg_ref[...].astype(jnp.float32)               # (C, Pb) in {0, 1}
        gts = gts_ref[...]                                 # (C, 1) fg totals

        lane = jax.lax.broadcasted_iota(jnp.int32, (C, Pb), 1)

        # In-block inclusive prefix sum of fg along lanes: log2(Pb)
        # Hillis-Steele roll+add steps on the XLU/VPU slots (replaces the
        # (C,Pb)x(Pb,Pb) triangular MXU matmul of the previous version).
        cum = fg
        shift = 1
        while shift < Pb:
            rolled = pltpu.roll(cum, shift=shift, axis=1)
            cum = cum + jnp.where(lane >= shift, rolled, 0.0)
            shift *= 2
        cum_fg = cum + cum_carry_ref[...]                  # global inclusive cumsum

        # jaccard_i = 1 - (gts - cumfg_i) / (gts + (i + 1) - cumfg_i)
        #   (cumsum(1 - fg)_i == (i + 1) - cumfg_i, so no second scan needed)
        pos1 = (lane + (k * Pb + 1)).astype(jnp.float32)   # global index i + 1
        union = gts + pos1 - cum_fg
        # TODO(synk): pl.reciprocal(approx=True) would move this divide onto the
        # EUP slot but adds ~1e-3 relative error; kept exact for the tolerance.
        jac = 1.0 - (gts - cum_fg) / union

        # jaccard_{i-1}: roll by one lane + carried last-jac of the previous
        # block (carry is 0 at k == 0, so grad[0] == jaccard[0]).
        prev = jnp.where(lane == 0, jac_carry_ref[...],
                         pltpu.roll(jac, shift=1, axis=1))
        grad = jac - prev

        # err == -key; the sign is folded into the final (-1/C) scale.
        per_class = jnp.sum(key * grad, axis=1, keepdims=True)        # (C, 1)
        out_ref[...] = out_ref[...] + jnp.sum(per_class, axis=0, keepdims=True)

        # Carries for the next block.
        cum_carry_ref[...] = cum_fg[:, Pb - 1:Pb]
        jac_carry_ref[...] = jac[:, Pb - 1:Pb]

    @pl.when(k == pl.num_programs(0) - 1)
    def _():
        out_ref[...] = out_ref[...] * (-1.0 / C)


# ----------------------------------------------------------------------------
# Wrapper (LovaszSoftmax.forward equivalent)
# ----------------------------------------------------------------------------
@functools.partial(jax.jit, static_argnames=("n_classes", "block_p1", "block_p2"))
def lovasz_softmax(inputs, targets, *, n_classes, block_p1=8192, block_p2=8192):
    """Lovasz-Softmax forward.

    block_p1: pixels per grid step of the elementwise kernel (multiple of 128).
    block_p2: pixels per grid step of the scan kernel (multiple of 128).
    With the matmul-free scan there is no quadratic VMEM term, so both can be
    raised aggressively (8K-32K) to amortize per-grid-step overhead.
    """
    assert block_p1 % 128 == 0 and block_p2 % 128 == 0
    C = n_classes

    logits = inputs.reshape(-1, C).astype(jnp.float32)     # (P, C)
    labels = targets.reshape(-1).astype(jnp.int32)         # (P,)
    P = logits.shape[0]

    # Lane-dense layout: classes on sublanes, pixels on lanes.
    # TODO(synk): a channel-major upstream layout ((C, P) already) would remove
    # this materialized host-side transpose.
    logits_t = logits.T                                    # (C, P)
    labels_row = labels.reshape(1, P)                      # (1, P)

    # Pad the pixel axis so both kernels' block sizes divide it; padded pixels
    # carry label -1 so kernel 1 emits key = 0, fg = 0 (zero contribution).
    pitch = math.lcm(block_p1, block_p2)
    P_pad = pl.cdiv(P, pitch) * pitch
    pad = P_pad - P
    if pad:
        logits_t = jnp.pad(logits_t, ((0, 0), (0, pad)))
        labels_row = jnp.pad(labels_row, ((0, 0), (0, pad)), constant_values=-1)
    nb1 = P_pad // block_p1
    nb2 = P_pad // block_p2

    key, fg, partials = pl.pallas_call(
        _softmax_key_kernel,
        out_shape=(
            jax.ShapeDtypeStruct((C, P_pad), jnp.float32),      # negated keys
            jax.ShapeDtypeStruct((C, P_pad), jnp.bfloat16),     # one-hot fg
            jax.ShapeDtypeStruct((C, nb1 * 128), jnp.float32),  # per-block fg sums
        ),
        grid_spec=pltpu.PrefetchScalarGridSpec(
            num_scalar_prefetch=0,
            grid=(nb1,),
            in_specs=[
                pl.BlockSpec((C, block_p1), lambda i: (0, i)),
                pl.BlockSpec((1, block_p1), lambda i: (0, i)),
            ],
            out_specs=(
                pl.BlockSpec((C, block_p1), lambda i: (0, i)),
                pl.BlockSpec((C, block_p1), lambda i: (0, i)),
                pl.BlockSpec((C, 128), lambda i: (0, i)),
            ),
        ),
        compiler_params=pltpu.CompilerParams(
            dimension_semantics=("parallel",),
        ),
    )(logits_t, labels_row)

    # TODO(synk): a full per-class descending sort has no clean Pallas
    # equivalent; done with XLA's lax.sort along the contiguous lane axis.
    # The key is already negated, so ascending sort == descending by error.
    key_sorted, fg_sorted = jax.lax.sort((key, fg), dimension=1, num_keys=1)

    # Per-class foreground totals from the tiny per-block partials (no full
    # re-read of the (C, P) fg array).
    gts = jnp.sum(partials, axis=1, keepdims=True)          # (C, 1)

    # Per-block "has any nonzero error" flags for the scan kernel (scalar
    # prefetch -> SMEM). Keys are <= 0; lane 0 of each block holds the largest
    # remaining error of that block for each class.
    heads = key_sorted[:, ::block_p2]                        # (C, nb2)
    flags = jnp.any(heads < 0.0, axis=0).astype(jnp.int32)   # (nb2,)

    loss = pl.pallas_call(
        _lovasz_scan_kernel,
        out_shape=jax.ShapeDtypeStruct((1, 1), jnp.float32),
        grid_spec=pltpu.PrefetchScalarGridSpec(
            num_scalar_prefetch=1,
            grid=(nb2,),
            in_specs=[
                pl.BlockSpec((C, block_p2), lambda k, flags: (0, k)),
                pl.BlockSpec((C, block_p2), lambda k, flags: (0, k)),
                pl.BlockSpec((C, 1), lambda k, flags: (0, 0)),
            ],
            out_specs=pl.BlockSpec((1, 1), lambda k, flags: (0, 0)),
            scratch_shapes=[
                pltpu.VMEM((C, 1), jnp.float32),   # cumulative fg carry
                pltpu.VMEM((C, 1), jnp.float32),   # last-jaccard carry
            ],
        ),
        compiler_params=pltpu.CompilerParams(
            dimension_semantics=("arbitrary",),
        ),
    )(flags, key_sorted, fg_sorted, gts)

    return loss[0, 0]


# ----------------------------------------------------------------------------
# Pure-JAX reference (mirrors the PyTorch module) for a correctness check
# ----------------------------------------------------------------------------
def _reference(inputs, targets, n_classes):
    C = n_classes
    probas = jax.nn.softmax(inputs.reshape(-1, C).astype(jnp.float32), axis=-1)
    labels = targets.reshape(-1).astype(jnp.int32)
    losses = []
    for c in range(C):
        fg = (labels == c).astype(jnp.float32)
        errors = jnp.abs(fg - probas[:, c])
        perm = jnp.argsort(-errors)
        errors_sorted = errors[perm]
        fg_sorted = fg[perm]
        gts = fg_sorted.sum()
        intersection = gts - jnp.cumsum(fg_sorted)
        union = gts + jnp.cumsum(1.0 - fg_sorted)
        jaccard = 1.0 - intersection / union
        grad = jnp.concatenate([jaccard[:1], jaccard[1:] - jaccard[:-1]])
        losses.append(jnp.dot(errors_sorted, grad))
    return sum(losses) / len(losses)


if __name__ == "__main__":
    n_classes = 4
    B, H, W = 2, 16, 16

    key = jax.random.PRNGKey(0)
    k1, k2 = jax.random.split(key)
    inputs = jax.random.normal(k1, (B, H, W, n_classes), dtype=jnp.float32)
    targets = jax.random.randint(k2, (B, H, W), 0, n_classes, dtype=jnp.int32)

    # Small, different block sizes so the demo runs multiple grid steps in both
    # kernels and exercises the cross-block scan carries; raise both (8K-32K)
    # for real-sized inputs.
    loss = lovasz_softmax(inputs, targets, n_classes=n_classes,
                          block_p1=256, block_p2=128)
    loss = jax.block_until_ready(loss)

    ref = _reference(inputs, targets, n_classes)
    assert jnp.allclose(loss, ref, rtol=1e-4, atol=1e-4), (loss, ref)

    print("KERNEL_OK")
</pallas_src>

<mosaic_0001>
module attributes {stable_mosaic.version = 11 : i64} {
  func.func @_softmax_key_kernel(%arg0: i32, %arg1: memref<4x256xf32, #tpu.memory_space<vmem>>, %arg2: memref<1x256xi32, #tpu.memory_space<vmem>>, %arg3: memref<4x256xf32, #tpu.memory_space<vmem>>, %arg4: memref<4x256xbf16, #tpu.memory_space<vmem>>, %arg5: memref<4x128xf32, #tpu.memory_space<vmem>>) attributes {dimension_semantics = [#tpu.dimension_semantics<parallel>], iteration_bounds = array<i64: 2>, scalar_prefetch = 0 : i64, scratch_operands = 0 : i64, tpu.core_type = #tpu.core_type<tc>, window_params = [{transform_indices = @transform_0, window_bounds = array<i64: 4, 256>}, {transform_indices = @transform_1, window_bounds = array<i64: 1, 256>}, {transform_indices = @transform_2, window_bounds = array<i64: 4, 256>}, {transform_indices = @transform_3, window_bounds = array<i64: 4, 256>}, {transform_indices = @transform_4, window_bounds = array<i64: 4, 128>}]} {
    %c0 = arith.constant 0 : index
    %c0_0 = arith.constant 0 : index
    %0 = vector.load %arg1[%c0, %c0_0] : memref<4x256xf32, #tpu.memory_space<vmem>>, vector<4x256xf32>
    %cst = arith.constant dense<0xFF800000> : vector<256xf32>
    %1 = vector.multi_reduction <maximumf>, %0, %cst [0] : vector<4x256xf32> to vector<256xf32>
    %2 = vector.shape_cast %1 : vector<256xf32> to vector<1x256xf32>
    %3 = vector.broadcast %2 : vector<1x256xf32> to vector<4x256xf32>
    %4 = arith.subf %0, %3 : vector<4x256xf32>
    %5 = math.exp %4 : vector<4x256xf32>
    %cst_1 = arith.constant dense<0.000000e+00> : vector<256xf32>
    %6 = vector.multi_reduction <add>, %5, %cst_1 [0] : vector<4x256xf32> to vector<256xf32>
    %7 = vector.shape_cast %6 : vector<256xf32> to vector<1x256xf32>
    %8 = tpu.reciprocal %7 : vector<1x256xf32> -> vector<1x256xf32>
    %9 = vector.broadcast %8 : vector<1x256xf32> to vector<4x256xf32>
    %10 = arith.mulf %5, %9 : vector<4x256xf32>
    %c0_2 = arith.constant 0 : index
    %c0_3 = arith.constant 0 : index
    %11 = vector.load %arg2[%c0_2, %c0_3] : memref<1x256xi32, #tpu.memory_space<vmem>>, vector<1x256xi32>
    %12 = tpu.iota {dimensions = array<i32: 0>} : vector<4x256xi32>
    %13 = vector.broadcast %11 : vector<1x256xi32> to vector<4x256xi32>
    %14 = arith.cmpi eq, %13, %12 : vector<4x256xi32>
    %15 = arith.extui %14 : vector<4x256xi1> to vector<4x256xi32>
    %16 = arith.sitofp %15 : vector<4x256xi32> to vector<4x256xf32>
    %c0_i32 = arith.constant 0 : i32
    %17 = vector.broadcast %c0_i32 : i32 to vector<1x256xi32>
    %18 = arith.cmpi sge, %11, %17 : vector<1x256xi32>
    %19 = arith.extui %18 : vector<1x256xi1> to vector<1x256xi32>
    %20 = arith.sitofp %19 : vector<1x256xi32> to vector<1x256xf32>
    %21 = arith.subf %16, %10 : vector<4x256xf32>
    %22 = math.absf %21 : vector<4x256xf32>
    %23 = vector.broadcast %20 : vector<1x256xf32> to vector<4x256xf32>
    %24 = arith.mulf %22, %23 : vector<4x256xf32>
    %cst_4 = arith.constant 0.000000e+00 : f32
    %25 = vector.broadcast %cst_4 : f32 to vector<4x256xf32>
    %26 = arith.subf %25, %24 : vector<4x256xf32>
    %c0_5 = arith.constant 0 : index
    %c0_6 = arith.constant 0 : index
    %27 = vector.load %arg3[%c0_5, %c0_6] : memref<4x256xf32, #tpu.memory_space<vmem>>, vector<4x256xf32>
    tpu.vector_store %arg3[%c0_5, %c0_6], %26 {strides = array<i32>} : memref<4x256xf32, #tpu.memory_space<vmem>>, vector<4x256xf32>,
    %28 = arith.truncf %16 : vector<4x256xf32> to vector<4x256xbf16>
    %c0_7 = arith.constant 0 : index
    %c0_8 = arith.constant 0 : index
    %29 = vector.load %arg4[%c0_7, %c0_8] : memref<4x256xbf16, #tpu.memory_space<vmem>>, vector<4x256xbf16>
    tpu.vector_store %arg4[%c0_7, %c0_8], %28 {strides = array<i32>} : memref<4x256xbf16, #tpu.memory_space<vmem>>, vector<4x256xbf16>,
    %cst_9 = arith.constant dense<0.000000e+00> : vector<4xf32>
    %30 = vector.multi_reduction <add>, %16, %cst_9 [1] : vector<4x256xf32> to vector<4xf32>
    %31 = vector.shape_cast %30 : vector<4xf32> to vector<4x1xf32>
    %32 = tpu.iota {dimensions = array<i32: 1>} : vector<4x128xi32>
    %c0_i32_10 = arith.constant 0 : i32
    %33 = vector.broadcast %c0_i32_10 : i32 to vector<4x128xi32>
    %34 = arith.cmpi eq, %32, %33 : vector<4x128xi32>
    %cst_11 = arith.constant 0.000000e+00 : f32
    %35 = vector.shape_cast %31 : vector<4x1xf32> to vector<4x1xf32>
    %36 = vector.broadcast %35 : vector<4x1xf32> to vector<4x128xf32>
    %37 = vector.broadcast %cst_11 : f32 to vector<4x128xf32>
    %38 = arith.select %34, %36, %37 : vector<4x128xi1>, vector<4x128xf32>
    %c0_12 = arith.constant 0 : index
    %c0_13 = arith.constant 0 : index
    %39 = vector.load %arg5[%c0_12, %c0_13] : memref<4x128xf32, #tpu.memory_space<vmem>>, vector<4x128xf32>
    tpu.vector_store %arg5[%c0_12, %c0_13], %38 {strides = array<i32>} : memref<4x128xf32, #tpu.memory_space<vmem>>, vector<4x128xf32>,
    return
  }
  func.func @transform_0(%arg0: i32) -> (i32, i32) {
    %c0_i32 = arith.constant 0 : i32
    %c0_i32_0 = arith.constant 0 : i32
    return %c0_i32, %arg0 : i32, i32
  }
  func.func @transform_1(%arg0: i32) -> (i32, i32) {
    %c0_i32 = arith.constant 0 : i32
    %c0_i32_0 = arith.constant 0 : i32
    return %c0_i32, %arg0 : i32, i32
  }
  func.func @transform_2(%arg0: i32) -> (i32, i32) {
    %c0_i32 = arith.constant 0 : i32
    %c0_i32_0 = arith.constant 0 : i32
    return %c0_i32, %arg0 : i32, i32
  }
  func.func @transform_3(%arg0: i32) -> (i32, i32) {
    %c0_i32 = arith.constant 0 : i32
    %c0_i32_0 = arith.constant 0 : i32
    return %c0_i32, %arg0 : i32, i32
  }
  func.func @transform_4(%arg0: i32) -> (i32, i32) {
    %c0_i32 = arith.constant 0 : i32
    %c0_i32_0 = arith.constant 0 : i32
    return %c0_i32, %arg0 : i32, i32
  }
}

module attributes {stable_mosaic.version = 11 : i64} {
  func.func @_lovasz_scan_kernel(%arg0: i32, %arg1: memref<4xi32, #tpu.memory_space<smem>>, %arg2: memref<4x128xf32, #tpu.memory_space<vmem>>, %arg3: memref<4x128xbf16, #tpu.memory_space<vmem>>, %arg4: memref<4x1xf32, #tpu.memory_space<vmem>>, %arg5: memref<1x1xf32, #tpu.memory_space<vmem>>, %arg6: memref<4x1xf32, #tpu.memory_space<vmem>>, %arg7: memref<4x1xf32, #tpu.memory_space<vmem>>) attributes {dimension_semantics = [#tpu.dimension_semantics<arbitrary>], iteration_bounds = array<i64: 4>, scalar_prefetch = 1 : i64, scratch_operands = 2 : i64, tpu.core_type = #tpu.core_type<tc>, window_params = [{transform_indices = @transform_0, window_bounds = array<i64: 4, 128>}, {transform_indices = @transform_1, window_bounds = array<i64: 4, 128>}, {pipeline_mode = #tpu.pipeline_mode<synchronous>, transform_indices = @transform_2, window_bounds = array<i64: 4, 1>}, {pipeline_mode = #tpu.pipeline_mode<synchronous>, transform_indices = @transform_3, window_bounds = array<i64: 1, 1>}]} {
    %c0_i32 = arith.constant 0 : i32
    %0 = arith.cmpi eq, %arg0, %c0_i32 : i32
    %1 = arith.extui %0 : i1 to i32
    %c0_i32_0 = arith.constant 0 : i32
    %2 = arith.cmpi ne, %1, %c0_i32_0 : i32
    scf.if %2 {
      %cst = arith.constant 0.000000e+00 : f32
      %11 = vector.broadcast %cst : f32 to vector<1x1xf32>
      %c0 = arith.constant 0 : index
      %c0_4 = arith.constant 0 : index
      %12 = vector.load %arg5[%c0, %c0_4] : memref<1x1xf32, #tpu.memory_space<vmem>>, vector<1x1xf32>
      tpu.vector_store %arg5[%c0, %c0_4], %11 {strides = array<i32>} : memref<1x1xf32, #tpu.memory_space<vmem>>, vector<1x1xf32>,
      %cst_5 = arith.constant 0.000000e+00 : f32
      %13 = vector.broadcast %cst_5 : f32 to vector<4x1xf32>
      %c0_6 = arith.constant 0 : index
      %c0_7 = arith.constant 0 : index
      %14 = vector.load %arg6[%c0_6, %c0_7] : memref<4x1xf32, #tpu.memory_space<vmem>>, vector<4x1xf32>
      tpu.vector_store %arg6[%c0_6, %c0_7], %13 {strides = array<i32>} : memref<4x1xf32, #tpu.memory_space<vmem>>, vector<4x1xf32>,
      %cst_8 = arith.constant 0.000000e+00 : f32
      %15 = vector.broadcast %cst_8 : f32 to vector<4x1xf32>
      %c0_9 = arith.constant 0 : index
      %c0_10 = arith.constant 0 : index
      %16 = vector.load %arg7[%c0_9, %c0_10] : memref<4x1xf32, #tpu.memory_space<vmem>>, vector<4x1xf32>
      tpu.vector_store %arg7[%c0_9, %c0_10], %15 {strides = array<i32>} : memref<4x1xf32, #tpu.memory_space<vmem>>, vector<4x1xf32>,
    } else {
    }
    %3 = arith.index_cast %arg0 : i32 to index
    %4 = memref.load %arg1[%3] : memref<4xi32, #tpu.memory_space<smem>>
    %c0_i32_1 = arith.constant 0 : i32
    %5 = arith.cmpi ne, %4, %c0_i32_1 : i32
    %6 = arith.extui %5 : i1 to i32
    %c0_i32_2 = arith.constant 0 : i32
    %7 = arith.cmpi ne, %6, %c0_i32_2 : i32
    scf.if %7 {
      %c0 = arith.constant 0 : index
      %c0_4 = arith.constant 0 : index
      %11 = vector.load %arg2[%c0, %c0_4] : memref<4x128xf32, #tpu.memory_space<vmem>>, vector<4x128xf32>
      %c0_5 = arith.constant 0 : index
      %c0_6 = arith.constant 0 : index
      %12 = vector.load %arg3[%c0_5, %c0_6] : memref<4x128xbf16, #tpu.memory_space<vmem>>, vector<4x128xbf16>
      %13 = arith.extf %12 : vector<4x128xbf16> to vector<4x128xf32>
      %c0_7 = arith.constant 0 : index
      %c0_8 = arith.constant 0 : index
      %14 = vector.load %arg4[%c0_7, %c0_8] : memref<4x1xf32, #tpu.memory_space<vmem>>, vector<4x1xf32>
      %15 = tpu.iota {dimensions = array<i32: 1>} : vector<4x128xi32>
      %c1_i32 = arith.constant 1 : i32
      %16 = tpu.dynamic_rotate %13 by %c1_i32 dim 1 : vector<4x128xf32>, i32 -> vector<4x128xf32>
      %c1_i32_9 = arith.constant 1 : i32
      %17 = vector.broadcast %c1_i32_9 : i32 to vector<4x128xi32>
      %18 = arith.cmpi sge, %15, %17 : vector<4x128xi32>
      %cst = arith.constant 0.000000e+00 : f32
      %19 = vector.broadcast %cst : f32 to vector<4x128xf32>
      %20 = arith.select %18, %16, %19 : vector<4x128xi1>, vector<4x128xf32>
      %21 = arith.addf %13, %20 : vector<4x128xf32>
      %c2_i32 = arith.constant 2 : i32
      %22 = tpu.dynamic_rotate %21 by %c2_i32 dim 1 : vector<4x128xf32>, i32 -> vector<4x128xf32>
      %c2_i32_10 = arith.constant 2 : i32
      %23 = vector.broadcast %c2_i32_10 : i32 to vector<4x128xi32>
      %24 = arith.cmpi sge, %15, %23 : vector<4x128xi32>
      %cst_11 = arith.constant 0.000000e+00 : f32
      %25 = vector.broadcast %cst_11 : f32 to vector<4x128xf32>
      %26 = arith.select %24, %22, %25 : vector<4x128xi1>, vector<4x128xf32>
      %27 = arith.addf %21, %26 : vector<4x128xf32>
      %c4_i32 = arith.constant 4 : i32
      %28 = tpu.dynamic_rotate %27 by %c4_i32 dim 1 : vector<4x128xf32>, i32 -> vector<4x128xf32>
      %c4_i32_12 = arith.constant 4 : i32
      %29 = vector.broadcast %c4_i32_12 : i32 to vector<4x128xi32>
      %30 = arith.cmpi sge, %15, %29 : vector<4x128xi32>
      %cst_13 = arith.constant 0.000000e+00 : f32
      %31 = vector.broadcast %cst_13 : f32 to vector<4x128xf32>
      %32 = arith.select %30, %28, %31 : vector<4x128xi1>, vector<4x128xf32>
      %33 = arith.addf %27, %32 : vector<4x128xf32>
      %c8_i32 = arith.constant 8 : i32
      %34 = tpu.dynamic_rotate %33 by %c8_i32 dim 1 : vector<4x128xf32>, i32 -> vector<4x128xf32>
      %c8_i32_14 = arith.constant 8 : i32
      %35 = vector.broadcast %c8_i32_14 : i32 to vector<4x128xi32>
      %36 = arith.cmpi sge, %15, %35 : vector<4x128xi32>
      %cst_15 = arith.constant 0.000000e+00 : f32
      %37 = vector.broadcast %cst_15 : f32 to vector<4x128xf32>
      %38 = arith.select %36, %34, %37 : vector<4x128xi1>, vector<4x128xf32>
      %39 = arith.addf %33, %38 : vector<4x128xf32>
      %c16_i32 = arith.constant 16 : i32
      %40 = tpu.dynamic_rotate %39 by %c16_i32 dim 1 : vector<4x128xf32>, i32 -> vector<4x128xf32>
      %c16_i32_16 = arith.constant 16 : i32
      %41 = vector.broadcast %c16_i32_16 : i32 to vector<4x128xi32>
      %42 = arith.cmpi sge, %15, %41 : vector<4x128xi32>
      %cst_17 = arith.constant 0.000000e+00 : f32
      %43 = vector.broadcast %cst_17 : f32 to vector<4x128xf32>
      %44 = arith.select %42, %40, %43 : vector<4x128xi1>, vector<4x128xf32>
      %45 = arith.addf %39, %44 : vector<4x128xf32>
      %c32_i32 = arith.constant 32 : i32
      %46 = tpu.dynamic_rotate %45 by %c32_i32 dim 1 : vector<4x128xf32>, i32 -> vector<4x128xf32>
      %c32_i32_18 = arith.constant 32 : i32
      %47 = vector.broadcast %c32_i32_18 : i32 to vector<4x128xi32>
      %48 = arith.cmpi sge, %15, %47 : vector<4x128xi32>
      %cst_19 = arith.constant 0.000000e+00 : f32
      %49 = vector.broadcast %cst_19 : f32 to vector<4x128xf32>
      %50 = arith.select %48, %46, %49 : vector<4x128xi1>, vector<4x128xf32>
      %51 = arith.addf %45, %50 : vector<4x128xf32>
      %c64_i32 = arith.constant 64 : i32
      %52 = tpu.dynamic_rotate %51 by %c64_i32 dim 1 : vector<4x128xf32>, i32 -> vector<4x128xf32>
      %c64_i32_20 = arith.constant 64 : i32
      %53 = vector.broadcast %c64_i32_20 : i32 to vector<4x128xi32>
      %54 = arith.cmpi sge, %15, %53 : vector<4x128xi32>
      %cst_21 = arith.constant 0.000000e+00 : f32
      %55 = vector.broadcast %cst_21 : f32 to vector<4x128xf32>
      %56 = arith.select %54, %52, %55 : vector<4x128xi1>, vector<4x128xf32>
      %57 = arith.addf %51, %56 : vector<4x128xf32>
      %c0_22 = arith.constant 0 : index
      %c0_23 = arith.constant 0 : index
      %58 = vector.load %arg6[%c0_22, %c0_23] : memref<4x1xf32, #tpu.memory_space<vmem>>, vector<4x1xf32>
      %59 = vector.broadcast %58 : vector<4x1xf32> to vector<4x128xf32>
      %60 = arith.addf %57, %59 : vector<4x128xf32>
      %c128_i32 = arith.constant 128 : i32
      %61 = arith.muli %arg0, %c128_i32 : i32
      %c1_i32_24 = arith.constant 1 : i32
      %62 = arith.addi %61, %c1_i32_24 : i32
      %63 = vector.broadcast %62 : i32 to vector<4x128xi32>
      %64 = arith.addi %15, %63 : vector<4x128xi32>
      %65 = arith.sitofp %64 : vector<4x128xi32> to vector<4x128xf32>
      %66 = vector.broadcast %14 : vector<4x1xf32> to vector<4x128xf32>
      %67 = arith.addf %66, %65 : vector<4x128xf32>
      %68 = arith.subf %67, %60 : vector<4x128xf32>
      %69 = vector.broadcast %14 : vector<4x1xf32> to vector<4x128xf32>
      %70 = arith.subf %69, %60 : vector<4x128xf32>
      %71 = arith.divf %70, %68 : vector<4x128xf32>
      %cst_25 = arith.constant 1.000000e+00 : f32
      %72 = vector.broadcast %cst_25 : f32 to vector<4x128xf32>
      %73 = arith.subf %72, %71 : vector<4x128xf32>
      %c0_i32_26 = arith.constant 0 : i32
      %74 = vector.broadcast %c0_i32_26 : i32 to vector<4x128xi32>
      %75 = arith.cmpi eq, %15, %74 : vector<4x128xi32>
      %c0_27 = arith.constant 0 : index
      %c0_28 = arith.constant 0 : index
      %76 = vector.load %arg7[%c0_27, %c0_28] : memref<4x1xf32, #tpu.memory_space<vmem>>, vector<4x1xf32>
      %c1_i32_29 = arith.constant 1 : i32
      %77 = tpu.dynamic_rotate %73 by %c1_i32_29 dim 1 : vector<4x128xf32>, i32 -> vector<4x128xf32>
      %78 = vector.shape_cast %76 : vector<4x1xf32> to vector<4x1xf32>
      %79 = vector.broadcast %78 : vector<4x1xf32> to vector<4x128xf32>
      %80 = arith.select %75, %79, %77 : vector<4x128xi1>, vector<4x128xf32>
      %81 = arith.subf %73, %80 : vector<4x128xf32>
      %82 = arith.mulf %11, %81 : vector<4x128xf32>
      %cst_30 = arith.constant dense<0.000000e+00> : vector<4xf32>
      %83 = vector.multi_reduction <add>, %82, %cst_30 [1] : vector<4x128xf32> to vector<4xf32>
      %84 = vector.shape_cast %83 : vector<4xf32> to vector<4x1xf32>
      %c0_31 = arith.constant 0 : index
      %c0_32 = arith.constant 0 : index
      %85 = vector.load %arg5[%c0_31, %c0_32] : memref<1x1xf32, #tpu.memory_space<vmem>>, vector<1x1xf32>
      %cst_33 = arith.constant dense<0.000000e+00> : vector<1xf32>
      %86 = vector.multi_reduction <add>, %84, %cst_33 [0] : vector<4x1xf32> to vector<1xf32>
      %87 = vector.shape_cast %86 : vector<1xf32> to vector<1x1xf32>
      %88 = arith.addf %85, %87 : vector<1x1xf32>
      %c0_34 = arith.constant 0 : index
      %c0_35 = arith.constant 0 : index
      %89 = vector.load %arg5[%c0_34, %c0_35] : memref<1x1xf32, #tpu.memory_space<vmem>>, vector<1x1xf32>
      tpu.vector_store %arg5[%c0_34, %c0_35], %88 {strides = array<i32>} : memref<1x1xf32, #tpu.memory_space<vmem>>, vector<1x1xf32>,
      %90 = vector.extract_strided_slice %60 {offsets = [0, 127], sizes = [4, 1], strides = [1, 1]} : vector<4x128xf32> to vector<4x1xf32>
      %c0_36 = arith.constant 0 : index
      %c0_37 = arith.constant 0 : index
      %91 = vector.load %arg6[%c0_36, %c0_37] : memref<4x1xf32, #tpu.memory_space<vmem>>, vector<4x1xf32>
      tpu.vector_store %arg6[%c0_36, %c0_37], %90 {strides = array<i32>} : memref<4x1xf32, #tpu.memory_space<vmem>>, vector<4x1xf32>,
      %92 = vector.extract_strided_slice %73 {offsets = [0, 127], sizes = [4, 1], strides = [1, 1]} : vector<4x128xf32> to vector<4x1xf32>
      %c0_38 = arith.constant 0 : index
      %c0_39 = arith.constant 0 : index
      %93 = vector.load %arg7[%c0_38, %c0_39] : memref<4x1xf32, #tpu.memory_space<vmem>>, vector<4x1xf32>
      tpu.vector_store %arg7[%c0_38, %c0_39], %92 {strides = array<i32>} : memref<4x1xf32, #tpu.memory_space<vmem>>, vector<4x1xf32>,
    } else {
    }
    %c3_i32 = arith.constant 3 : i32
    %8 = arith.cmpi eq, %arg0, %c3_i32 : i32
    %9 = arith.extui %8 : i1 to i32
    %c0_i32_3 = arith.constant 0 : i32
    %10 = arith.cmpi ne, %9, %c0_i32_3 : i32
    scf.if %10 {
      %c0 = arith.constant 0 : index
      %c0_4 = arith.constant 0 : index
      %11 = vector.load %arg5[%c0, %c0_4] : memref<1x1xf32, #tpu.memory_space<vmem>>, vector<1x1xf32>
      %cst = arith.constant -2.500000e-01 : f32
      %12 = vector.broadcast %cst : f32 to vector<1x1xf32>
      %13 = arith.mulf %11, %12 : vector<1x1xf32>
      %c0_5 = arith.constant 0 : index
      %c0_6 = arith.constant 0 : index
      %14 = vector.load %arg5[%c0_5, %c0_6] : memref<1x1xf32, #tpu.memory_space<vmem>>, vector<1x1xf32>
      tpu.vector_store %arg5[%c0_5, %c0_6], %13 {strides = array<i32>} : memref<1x1xf32, #tpu.memory_space<vmem>>, vector<1x1xf32>,
    } else {
    }
    return
  }
  func.func @transform_0(%arg0: i32, %arg1: memref<4xi32, #tpu.memory_space<smem>>) -> (i32, i32) {
    %c0_i32 = arith.constant 0 : i32
    %c0_i32_0 = arith.constant 0 : i32
    return %c0_i32, %arg0 : i32, i32
  }
  func.func @transform_1(%arg0: i32, %arg1: memref<4xi32, #tpu.memory_space<smem>>) -> (i32, i32) {
    %c0_i32 = arith.constant 0 : i32
    %c0_i32_0 = arith.constant 0 : i32
    return %c0_i32, %arg0 : i32, i32
  }
  func.func @transform_2(%arg0: i32, %arg1: memref<4xi32, #tpu.memory_space<smem>>) -> (i32, i32) {
    %c0_i32 = arith.constant 0 : i32
    %c0_i32_0 = arith.constant 0 : i32
    %c0_i32_1 = arith.constant 0 : i32
    return %c0_i32, %c0_i32_0 : i32, i32
  }
  func.func @transform_3(%arg0: i32, %arg1: memref<4xi32, #tpu.memory_space<smem>>) -> (i32, i32) {
    %c0_i32 = arith.constant 0 : i32
    %c0_i32_0 = arith.constant 0 : i32
    %c0_i32_1 = arith.constant 0 : i32
    return %c0_i32, %c0_i32_0 : i32, i32
  }
}

</mosaic_0001>

<llo_original>
// kernel: lovasz_softmax.2
$region0: #{lovasz_softmax.2}
  #allocation0 [shape = 'u32[]', space=smem, size = 0x4, offset = 0x4, fixed_abs, tag = 'smem constant byte address 0x4 - core index']
  #allocation1 [shape = 'u32[144,128]{1,0:T(1,128)}', space=vmem, size = 0x12000, scoped, tag = 'internal scratch']
  %s0 = inlined_call_operand.vmem [shape: f32[4,512], index: 0, kind: input, shape index: {}]
  %s1 = inlined_call_operand.vmem [shape: s32[1,512], index: 1, kind: input, shape index: {}]
  %s2 = inlined_call_operand.vmem [shape: f32[4,512], index: 2, kind: output, shape index: {0}]
  %s3 = inlined_call_operand.vmem [shape: bf16[4,512], index: 3, kind: output, shape index: {1}]
  %s4 = inlined_call_operand.vmem [shape: f32[4,256], index: 4, kind: output, shape index: {2}]
  %5 = xla_tuple %s2, %s3, %s4
  %s6 = sld [smem:[#allocation0]]
  $region57: #{lovasz_softmax.2} parent=0
    _
  %s8 = ssub.s32 1, %s6
  %s9 = scalar_select 0, %s8, %s6
  loop: start=0, step=1, limit=4
  $region2: #{lovasz_softmax.2} parent=0 // loop_pre_header
    _
  $region3: #{lovasz_softmax.2} parent=0 // loop_header
    %s11 = sphi 0, %s15
    %p12 = scmp.ge.s32.totalorder %s11, 4
    %s21 = sphi 0, %s23
    %s24 = sphi 0, %s21
    %s25 = sphi 0, %s24
    %s41 = sphi 0, %s25
    %s47 = sphi 0, %s49
    %s50 = sphi 0, %s47
    %s51 = sphi 0, %s50
    %s67 = sphi 0, %s51
    %s73 = sphi 0, %s75
    %s76 = sphi 0, %s73
    %s77 = sphi 0, %s76
    %s93 = sphi 0, %s77
    %s99 = sphi 0, %s101
    %s102 = sphi 0, %s99
    %s103 = sphi 0, %s102
    %s119 = sphi 0, %s103
    %s125 = sphi 0, %s127
    %s128 = sphi 0, %s125
    %s129 = sphi 0, %s128
    %s145 = sphi 0, %s129
  $region4: #{lovasz_softmax.2} parent=0 // loop_header_branch
    %14 = sbr.rel (%p12) target = $region8
  $region5: #{lovasz_softmax.2} parent=0 // loop_body
    %s16 = ssub.s32 %s11, 1
    %s17 = ssub.s32 %s11, 2
    %s18 = sadd.s32 %s11, 1
    %s19 = ssub.s32 %s11, %s18
    %p20 = scmp.eq.s32.totalorder %s19, 0
    %s22 = sadd.s32 %s21, 1
    %s23 = scalar_select %p20, %s21, %s22
    %p26 = pneg %p20
    %p27 = scmp.eq.s32.totalorder %s11, 1
    %p28 = por %p26, %p27
    %p29 = scmp.ne.s32.totalorder %s21, %s24
    %p30 = scmp.eq.s32.totalorder %s11, 0
    %p31 = por %p29, %p30
    %p32 = scmp.ne.s32.totalorder %s21, %s24
    %p33 = scmp.eq.s32.totalorder %s16, 1
    %p34 = por %p32, %p33
    %p35 = scmp.ne.s32.totalorder %s24, %s25
    %p36 = scmp.eq.s32.totalorder %s16, 0
    %p37 = por %p35, %p36
    %p38 = scmp.ne.s32.totalorder %s24, %s25
    %p39 = scmp.eq.s32.totalorder %s17, 1
    %p40 = por %p38, %p39
    %p42 = scmp.ne.s32.totalorder %s25, %s41
    %p43 = scmp.eq.s32.totalorder %s17, 0
    %p44 = por %p42, %p43
    %s45 = ssub.s32 %s11, %s18
    %p46 = scmp.eq.s32.totalorder %s45, 0
    %s48 = sadd.s32 %s47, 1
    %s49 = scalar_select %p46, %s47, %s48
    %p52 = pneg %p46
    %p53 = scmp.eq.s32.totalorder %s11, 1
    %p54 = por %p52, %p53
    %p55 = scmp.ne.s32.totalorder %s47, %s50
    %p56 = scmp.eq.s32.totalorder %s11, 0
    %p57 = por %p55, %p56
    %p58 = scmp.ne.s32.totalorder %s47, %s50
    %p59 = scmp.eq.s32.totalorder %s16, 1
    %p60 = por %p58, %p59
    %p61 = scmp.ne.s32.totalorder %s50, %s51
    %p62 = scmp.eq.s32.totalorder %s16, 0
    %p63 = por %p61, %p62
    %p64 = scmp.ne.s32.totalorder %s50, %s51
    %p65 = scmp.eq.s32.totalorder %s17, 1
    %p66 = por %p64, %p65
    %p68 = scmp.ne.s32.totalorder %s51, %s67
    %p69 = scmp.eq.s32.totalorder %s17, 0
    %p70 = por %p68, %p69
    %s71 = ssub.s32 %s11, %s18
    %p72 = scmp.eq.s32.totalorder %s71, 0
    %s74 = sadd.s32 %s73, 1
    %s75 = scalar_select %p72, %s73, %s74
    %p78 = pneg %p72
    %p79 = scmp.eq.s32.totalorder %s11, 1
    %p80 = por %p78, %p79
    %p81 = scmp.ne.s32.totalorder %s73, %s76
    %p82 = scmp.eq.s32.totalorder %s11, 0
    %p83 = por %p81, %p82
    %p84 = scmp.ne.s32.totalorder %s73, %s76
    %p85 = scmp.eq.s32.totalorder %s16, 1
    %p86 = por %p84, %p85
    %p87 = scmp.ne.s32.totalorder %s76, %s77
    %p88 = scmp.eq.s32.totalorder %s16, 0
    %p89 = por %p87, %p88
    %p90 = scmp.ne.s32.totalorder %s76, %s77
    %p91 = scmp.eq.s32.totalorder %s17, 1
    %p92 = por %p90, %p91
    %p94 = scmp.ne.s32.totalorder %s77, %s93
    %p95 = scmp.eq.s32.totalorder %s17, 0
    %p96 = por %p94, %p95
    %s97 = ssub.s32 %s11, %s18
    %p98 = scmp.eq.s32.totalorder %s97, 0
    %s100 = sadd.s32 %s99, 1
    %s101 = scalar_select %p98, %s99, %s100
    %p104 = pneg %p98
    %p105 = scmp.eq.s32.totalorder %s11, 1
    %p106 = por %p104, %p105
    %p107 = scmp.ne.s32.totalorder %s99, %s102
    %p108 = scmp.eq.s32.totalorder %s11, 0
    %p109 = por %p107, %p108
    %p110 = scmp.ne.s32.totalorder %s99, %s102
    %p111 = scmp.eq.s32.totalorder %s16, 1
    %p112 = por %p110, %p111
    %p113 = scmp.ne.s32.totalorder %s102, %s103
    %p114 = scmp.eq.s32.totalorder %s16, 0
    %p115 = por %p113, %p114
    %p116 = scmp.ne.s32.totalorder %s102, %s103
    %p117 = scmp.eq.s32.totalorder %s17, 1
    %p118 = por %p116, %p117
    %p120 = scmp.ne.s32.totalorder %s103, %s119
    %p121 = scmp.eq.s32.totalorder %s17, 0
    %p122 = por %p120, %p121
    %s123 = ssub.s32 %s11, %s18
    %p124 = scmp.eq.s32.totalorder %s123, 0
    %s126 = sadd.s32 %s125, 1
    %s127 = scalar_select %p124, %s125, %s126
    %p130 = pneg %p124
    %p131 = scmp.eq.s32.totalorder %s11, 1
    %p132 = por %p130, %p131
    %p133 = scmp.ne.s32.totalorder %s125, %s128
    %p134 = scmp.eq.s32.totalorder %s11, 0
    %p135 = por %p133, %p134
    %p136 = scmp.ne.s32.totalorder %s125, %s128
    %p137 = scmp.eq.s32.totalorder %s16, 1
    %p138 = por %p136, %p137
    %p139 = scmp.ne.s32.totalorder %s128, %s129
    %p140 = scmp.eq.s32.totalorder %s16, 0
    %p141 = por %p139, %p140
    %p142 = scmp.ne.s32.totalorder %s128, %s129
    %p143 = scmp.eq.s32.totalorder %s17, 1
    %p144 = por %p142, %p143
    %p146 = scmp.ne.s32.totalorder %s129, %s145
    %p147 = scmp.eq.s32.totalorder %s17, 0
    %p148 = por %p146, %p147
    %p149 = scmp.le.s32.totalorder 1, %s11
    %p150 = scmp.lt.s32.totalorder %s11, 3
    %p151 = pnand %p149, %p150
    %p152 = pneg %p151
    // Predicated region
    $region9: #{lovasz_softmax.2} parent=5 // pred_check
      _
    $region10: #{lovasz_softmax.2} parent=5 // pred_check_branch
      %154 = sbr.rel (%p151) target = $region12
    $region11: #{lovasz_softmax.2} parent=5 // pred_region
      %s155 = ssub.s32 %s11, 1
    $region12: #{lovasz_softmax.2} parent=5 // pred_fallthru
      _
    %p156 = scmp.lt.s32.totalorder %s11, 2
    // Predicated region
    $region13: #{lovasz_softmax.2} parent=5 // pred_check
      %p157 = pneg %p156
    $region14: #{lovasz_softmax.2} parent=5 // pred_check_branch
      %159 = sbr.rel (%p157) target = $region16
    $region15: #{lovasz_softmax.2} parent=5 // pred_region
      // Predicated region
      $region17: #{lovasz_softmax.2} parent=15 // pred_check
        %p160 = pneg %p31
      $region18: #{lovasz_softmax.2} parent=15 // pred_check_branch
        %162 = sbr.rel (%p160) target = $region20
      $region19: #{lovasz_softmax.2} parent=15 // pred_region
        %s163 = smul.u32 2, %s11
        %p164 = scmp.lt.s32.totalorder %s163, 3
        %s165 = scalar_select %p164, %s163, 3
        %s166 = smul.addr %s165, 4
        %s167 = scalar_lea.vmem %s0, %s166
        %s168 = smul.u32 2, %s11
      $region20: #{lovasz_softmax.2} parent=15 // pred_fallthru
        _
      // Predicated region
      $region21: #{lovasz_softmax.2} parent=15 // pred_check
        %p169 = pneg %p57
      $region22: #{lovasz_softmax.2} parent=15 // pred_check_branch
        %171 = sbr.rel (%p169) target = $region24
      $region23: #{lovasz_softmax.2} parent=15 // pred_region
        %s172 = smul.u32 2, %s11
        %p173 = scmp.lt.s32.totalorder %s172, 3
        %s174 = scalar_select %p173, %s172, 3
        %s175 = scalar_lea.vmem %s1, %s174
        %s176 = smul.u32 2, %s11
      $region24: #{lovasz_softmax.2} parent=15 // pred_fallthru
        _
    $region16: #{lovasz_softmax.2} parent=5 // pred_fallthru
      _
    %p177 = scmp.le.s32.totalorder 1, %s11
    %p178 = scmp.lt.s32.totalorder %s11, 3
    %p179 = pnand %p177, %p178
    %p180 = pneg %p179
    // Predicated region
    $region25: #{lovasz_softmax.2} parent=5 // pred_check
      _
    $region26: #{lovasz_softmax.2} parent=5 // pred_check_branch
      %182 = sbr.rel (%p179) target = $region28
    $region27: #{lovasz_softmax.2} parent=5 // pred_region
      %s183 = ssub.s32 %s11, 1
      %s184 = smul.u32 2, %s16
      %p185 = scmp.lt.s32.totalorder %s184, 3
      %s186 = scalar_select %p185, %s184, 3
      %s187 = smul.addr %s186, 4
      %s188 = scalar_lea.vmem %s0, %s187
      %p189 = pneg %p37
      %p190 = pneg %p34
      %s191 = smul.u32 2, %s16
      %p192 = scmp.lt.s32.totalorder %s191, 3
      %s193 = scalar_select %p192, %s191, 3
      %s194 = scalar_lea.vmem %s1, %s193
      %p195 = pneg %p63
      %p196 = pneg %p60
      %p197 = pneg %p89
      %p198 = pneg %p86
      %s199 = smul.u32 2, %s16
      %p200 = scmp.lt.s32.totalorder %s199, 3
      %s201 = scalar_select %p200, %s199, 3
      %s202 = smul.addr %s201, 4
      %s203 = scalar_lea.vmem %s2, %s202
      %p204 = pneg %p115
      %p205 = pneg %p112
      %s206 = smul.u32 2, %s16
      %p207 = scmp.lt.s32.totalorder %s206, 3
      %s208 = scalar_select %p207, %s206, 3
      %s209 = smul.addr %s208, 2
      %s210 = scalar_lea.vmem %s3, %s209
      %p211 = pneg %p141
      %p212 = pneg %p138
      %p213 = scmp.lt.s32.totalorder %s16, 1
      %s214 = scalar_select %p213, %s16, 1
      %s215 = smul.addr %s214, 4
      %s216 = scalar_lea.vmem %s4, %s215
      %s217 = smul.u32 2, %s16
      %p218 = scmp.lt.s32.totalorder %s217, 3
      %s219 = scalar_select %p218, %s217, 3
      %s220 = smul.addr %s219, 4
      %s221 = scalar_lea.vmem %s0, %s220
      %s222 = smul.u32 2, %s16
      %s223 = smul.u32 2, %s16
      %p224 = scmp.lt.s32.totalorder %s223, 3
      %s225 = scalar_select %p224, %s223, 3
      %s226 = scalar_lea.vmem %s1, %s225
      %s227 = smul.u32 2, %s16
      %s228 = smul.u32 2, %s16
      %p229 = scmp.lt.s32.totalorder %s228, 3
      %s230 = scalar_select %p229, %s228, 3
      %s231 = smul.addr %s230, 4
      %s232 = scalar_lea.vmem %s2, %s231
      %s233 = smul.u32 2, %s16
      %s234 = smul.u32 2, %s16
      %p235 = scmp.lt.s32.totalorder %s234, 3
      %s236 = scalar_select %p235, %s234, 3
      %s237 = smul.addr %s236, 2
      %s238 = scalar_lea.vmem %s3, %s237
      %s239 = smul.u32 2, %s16
      %p240 = scmp.lt.s32.totalorder %s16, 1
      %s241 = scalar_select %p240, %s16, 1
      %s242 = smul.addr %s241, 4
      %s243 = scalar_lea.vmem %s4, %s242
      %v244 = vld [vmem:[%s221] sm:$0xff]
      %v246 = vcombine.high %v244, %v244
      %vm248 = vcmask 1043456
      %v249 = vsel %vm248, %v244, -inf
      %v250 = vrot.slane %v249, 4
      %v251 = vmax.f32 %v249, %v250
      %v252 = vrot.slane %v251, 2
      %v253 = vmax.f32 %v251, %v252
      %v254 = vrot.slane %v253, 1
      %v255 = vmax.f32 %v253, %v254
      %v256 = vsel %vm248, %v246, -inf
      %v257 = vrot.slane %v256, 4
      %v258 = vmax.f32 %v256, %v257
      %v259 = vrot.slane %v258, 2
      %v260 = vmax.f32 %v258, %v259
      %v261 = vrot.slane %v260, 1
      %v262 = vmax.f32 %v260, %v261
      %v265 = vcombine.low %v255, %v262
      %v267 = vsub.f32 %v244, %v265
      %v268 = vmul.f32 %v267, 1.442695
      %v269 = vpow.pop %v268
      %v271 = vcombine.high %v269, %v269
      %v273 = vsel %vm248, %v269, 0.0
      %v274 = vrot.slane %v273, 4
      %v275 = vadd.f32 %v273, %v274
      %v276 = vrot.slane %v275, 2
      %v277 = vadd.f32 %v275, %v276
      %v278 = vrot.slane %v277, 1
      %v279 = vadd.f32 %v277, %v278
      %v280 = vsel %vm248, %v271, 0.0
      %v281 = vrot.slane %v280, 4
      %v282 = vadd.f32 %v280, %v281
      %v283 = vrot.slane %v282, 2
      %v284 = vadd.f32 %v282, %v283
      %v285 = vrot.slane %v284, 1
      %v286 = vadd.f32 %v284, %v285
      %v287 = vrcp.pop %v279
      %v288 = vrcp.pop %v286
      %v291 = vcombine.low %v287, %v288
      %v293 = vmul.f32 %v269, %v291
      %v294 = vld [vmem:[%s226] sm:$0x3]
      %v295 = vlaneseq
      %v296 = vshrl.u32 %v295, 7
      %v297 = vlaneseq
      %v298 = vshrl.u32 %v297, 7
      %v299 = vsub.s32 0, %v298
      %v300 = vrot.slane %v294, %v299
      %v301 = vlaneseq
      %v302 = vshrl.u32 %v301, 7
      %v303 = vsub.s32 1, %v302
      %v304 = vrot.slane %v294, %v303
      %vm305 = vcmp.eq.s32.totalorder %v300, %v296
      %vm306 = vcmp.eq.s32.totalorder %v304, %v296
      %v307 = vsel %vm305, 1, 0
      %v308 = vsel %vm306, 1, 0
      %v309 = vcvt.s32.f32 %v307
      %v310 = vcvt.s32.f32 %v308
      %vm311 = vcmp.ge.s32.totalorder %v294, 0
      %v312 = vsel %vm311, 1, 0
      %v313 = vcvt.s32.f32 %v312
      %v315 = vcombine.high %v293, %v293
      %v317 = vsub.f32 %v309, %v293
      %v318 = vsub.f32 %v310, %v315
      %v319 = vand.u32 2147483647, %v317
      %v320 = vand.u32 2147483647, %v318
      %v322 = vlaneseq
      %v323 = vshrl.u32 %v322, 7
      %v324 = vsub.s32 0, %v323
      %v325 = vrot.slane %v313, %v324
      %v326 = vlaneseq
      %v327 = vshrl.u32 %v326, 7
      %v328 = vsub.s32 1, %v327
      %v329 = vrot.slane %v313, %v328
      %v332 = vmul.f32 %v319, %v325
      %v333 = vmul.f32 %v320, %v329
      %v334 = vsub.f32 0.0, %v332
      %v335 = vsub.f32 0.0, %v333
      %v338 = vcombine.low %v334, %v335
      %340 = vst [vmem:[%s232] sm:$0xff] %v338
      %v341 = vpack.c.bf16 %v309, %v309
      %v342 = vpack.c.bf16 %v310, %v310
      %v345 = vcombine.low %v341, %v342
      %v347 = vunpack.c.l.s4 1983009808
      %v348 = vunpack.c.0.s8 %v347
      %v349 = vlaneseq
      %v350 = vshrl.u32 %v349, 7
      %v351 = vsub.s32 %v348, %v350
      %v352 = vrot.slane %v345, %v351
      %354 = vst [vmem:[%s238] sm:$0xf] %v352
      %v355 = vsel %vm248, %v309, 0.0
      %v356 = vsel %vm248, %v310, 0.0
      %v357 = vadd.f32 %v355, %v356
      %358 = vadd.xlane.f32.xlu0 %v357
      %v359 = vpop.xlane.xlu0 %358
      %v360 = vlaneseq
      %v361 = vand.u32 %v360, 127
      %vm362 = vcmp.eq.s32.totalorder %v361, 0
      %v363 = vsel %vm362, %v359, 0.0
      %364 = vst [vmem:[%s243] sm:$0xf] %v363
      %s365 = smul.u32 2, %s16
      %p366 = scmp.lt.s32.totalorder %s365, 3
      %s367 = scalar_select %p366, %s365, 3
      %s368 = smul.addr %s367, 4
      %s369 = scalar_lea.vmem %s2, %s368
      %s370 = smul.u32 2, %s16
      %p371 = scmp.lt.s32.totalorder %s370, 3
      %s372 = scalar_select %p371, %s370, 3
      %s373 = smul.addr %s372, 2
      %s374 = scalar_lea.vmem %s3, %s373
      %p375 = scmp.lt.s32.totalorder %s16, 1
      %s376 = scalar_select %p375, %s16, 1
      %s377 = smul.addr %s376, 4
      %s378 = scalar_lea.vmem %s4, %s377
      // Predicated region
      $region29: #{lovasz_softmax.2} parent=27 // pred_check
        %p379 = pneg %p86
      $region30: #{lovasz_softmax.2} parent=27 // pred_check_branch
        %381 = sbr.rel (%p379) target = $region32
      $region31: #{lovasz_softmax.2} parent=27 // pred_region
        %s382 = smul.u32 2, %s16
      $region32: #{lovasz_softmax.2} parent=27 // pred_fallthru
        _
      // Predicated region
      $region33: #{lovasz_softmax.2} parent=27 // pred_check
        %p383 = pneg %p112
      $region34: #{lovasz_softmax.2} parent=27 // pred_check_branch
        %385 = sbr.rel (%p383) target = $region36
      $region35: #{lovasz_softmax.2} parent=27 // pred_region
        %s386 = smul.u32 2, %s16
      $region36: #{lovasz_softmax.2} parent=27 // pred_fallthru
        _
      // Predicated region
      $region37: #{lovasz_softmax.2} parent=27 // pred_check
        %p387 = pneg %p138
      $region38: #{lovasz_softmax.2} parent=27 // pred_check_branch
        %389 = sbr.rel (%p387) target = $region40
      $region39: #{lovasz_softmax.2} parent=27 // pred_region
        _
      $region40: #{lovasz_softmax.2} parent=27 // pred_fallthru
        _
    $region28: #{lovasz_softmax.2} parent=5 // pred_fallthru
      _
    %p390 = scmp.le.s32.totalorder 2, %s11
    // Predicated region
    $region41: #{lovasz_softmax.2} parent=5 // pred_check
      %p391 = pneg %p390
    $region42: #{lovasz_softmax.2} parent=5 // pred_check_branch
      %393 = sbr.rel (%p391) target = $region44
    $region43: #{lovasz_softmax.2} parent=5 // pred_region
      %s394 = ssub.s32 %s11, 2
      // Predicated region
      $region45: #{lovasz_softmax.2} parent=43 // pred_check
        %p395 = pneg %p92
      $region46: #{lovasz_softmax.2} parent=43 // pred_check_branch
        %397 = sbr.rel (%p395) target = $region48
      $region47: #{lovasz_softmax.2} parent=43 // pred_region
        %s398 = smul.u32 2, %s17
        %p399 = scmp.lt.s32.totalorder %s398, 3
        %s400 = scalar_select %p399, %s398, 3
        %s401 = smul.addr %s400, 4
        %s402 = scalar_lea.vmem %s2, %s401
      $region48: #{lovasz_softmax.2} parent=43 // pred_fallthru
        _
      // Predicated region
      $region49: #{lovasz_softmax.2} parent=43 // pred_check
        %p403 = pneg %p118
      $region50: #{lovasz_softmax.2} parent=43 // pred_check_branch
        %405 = sbr.rel (%p403) target = $region52
      $region51: #{lovasz_softmax.2} parent=43 // pred_region
        %s406 = smul.u32 2, %s17
        %p407 = scmp.lt.s32.totalorder %s406, 3
        %s408 = scalar_select %p407, %s406, 3
        %s409 = smul.addr %s408, 2
        %s410 = scalar_lea.vmem %s3, %s409
      $region52: #{lovasz_softmax.2} parent=43 // pred_fallthru
        _
      // Predicated region
      $region53: #{lovasz_softmax.2} parent=43 // pred_check
        %p411 = pneg %p144
      $region54: #{lovasz_softmax.2} parent=43 // pred_check_branch
        %413 = sbr.rel (%p411) target = $region56
      $region55: #{lovasz_softmax.2} parent=43 // pred_region
        %p414 = scmp.lt.s32.totalorder %s17, 1
        %s415 = scalar_select %p414, %s17, 1
        %s416 = smul.addr %s415, 4
        %s417 = scalar_lea.vmem %s4, %s416
      $region56: #{lovasz_softmax.2} parent=43 // pred_fallthru
        _
    $region44: #{lovasz_softmax.2} parent=5 // pred_fallthru
      _
  $region6: #{lovasz_softmax.2} parent=0 // loop_footer
    %s15 = sadd.s32 1, %s11
  $region7: #{lovasz_softmax.2} parent=0 // loop_footer_branch
    %10 = sbr.rel target = $region3
  $region8: #{lovasz_softmax.2} parent=0 // loop_exit
    _

// kernel: lovasz_softmax.3
$region0: #{lovasz_softmax.3}
  #allocation0 [shape = 'u32[]', space=smem, size = 0x4, offset = 0x4, fixed_abs, tag = 'smem constant byte address 0x4 - core index']
  #allocation1 [shape = 'u32[144,128]{1,0:T(1,128)}', space=vmem, size = 0x12000, scoped, tag = 'internal scratch']
  #allocation2 [shape = 'f32[4,1]{1,0:T(4,128)}', space=vmem, size = 0x800, scoped, tag = 'scratch operand']
  #allocation3 [shape = 'f32[4,1]{1,0:T(4,128)}', space=vmem, size = 0x800, scoped, tag = 'scratch operand']
  #allocation4 [shape = 's32[1]{0}', space=sflag, size = 0x4, scoped, tag = 'scoped memory for lovasz_softmax.3']
  #allocation5 [shape = 'u8[512]{0}', space=smem, size = 0x200, scoped, tag = 'prefetched SMEM operand 0']
  %s0 = inlined_call_operand.vmem [shape: s32[4], index: 0, kind: input, shape index: {}]
  %s1 = inlined_call_operand.vmem [shape: f32[4,512], index: 1, kind: input, shape index: {}]
  %s2 = inlined_call_operand.vmem [shape: bf16[4,512], index: 2, kind: input, shape index: {}]
  %s3 = inlined_call_operand.vmem [shape: f32[4,1], index: 3, kind: input, shape index: {}]
  %s4 = inlined_call_operand.hbm [shape: f32[1,1], index: 4, kind: output, shape index: {}]
  %s5 = sld [smem:[#allocation0]]
  $region57: #{lovasz_softmax.3} parent=0
    _
  %s7 = ssub.s32 1, %s5
  %s8 = scalar_select 0, %s7, %s5
  %s9 = sshll.u32 %s0, 4
  %s10 = int_to_ptr.vmem [resolvable:$true] %s9
  %12 = dma.vmem_to_smem %s10, 16, [#allocation5], [#allocation4]
  %13 = dma.done [#allocation4], 16
  %14 = sfence
  $region1: #{lovasz_softmax.3} parent=0
    #allocation6 [shape = 'u8[512]{0}', space=vmem, size = 0x400, scoped, tag = 'output window, operand 0, single buffered']
    #allocation7 [shape = 's32[2]{0}', space=sflag, size = 0x8, scoped, tag = 'scoped memory for lovasz_softmax.3']
    %15 = vsyncpa [#allocation7], 0
    loop: start=0, step=1, limit=6
    $region2: #{lovasz_softmax.3} parent=1 // loop_pre_header
      _
    $region3: #{lovasz_softmax.3} parent=1 // loop_header
      %s17 = sphi 0, %s21
      %p18 = scmp.ge.s32.totalorder %s17, 6
      %s27 = sphi 0, %s29
      %s30 = sphi 0, %s27
      %s31 = sphi 0, %s30
      %s47 = sphi 0, %s31
      %s53 = sphi 0, %s55
      %s56 = sphi 0, %s53
      %s57 = sphi 0, %s56
      %s73 = sphi 0, %s57
      %s77 = sphi 0, %s77
      %s79 = sphi 0, %s77
      %s80 = sphi 0, %s79
      %s94 = sphi 0, %s80
      %s98 = sphi 0, %s98
      %s100 = sphi 0, %s98
      %s101 = sphi 0, %s100
      %s115 = sphi 0, %s101
    $region4: #{lovasz_softmax.3} parent=1 // loop_header_branch
      %20 = sbr.rel (%p18) target = $region8
    $region5: #{lovasz_softmax.3} parent=1 // loop_body
      %s22 = ssub.s32 %s17, 1
      %s23 = ssub.s32 %s17, 2
      %s24 = sadd.s32 %s17, 1
      %s25 = ssub.s32 %s17, %s24
      %p26 = scmp.eq.s32.totalorder %s25, 0
      %s28 = sadd.s32 %s27, 1
      %s29 = scalar_select %p26, %s27, %s28
      %p32 = pneg %p26
      %p33 = scmp.eq.s32.totalorder %s17, 3
      %p34 = por %p32, %p33
      %p35 = scmp.ne.s32.totalorder %s27, %s30
      %p36 = scmp.eq.s32.totalorder %s17, 0
      %p37 = por %p35, %p36
      %p38 = scmp.ne.s32.totalorder %s27, %s30
      %p39 = scmp.eq.s32.totalorder %s22, 3
      %p40 = por %p38, %p39
      %p41 = scmp.ne.s32.totalorder %s30, %s31
      %p42 = scmp.eq.s32.totalorder %s22, 0
      %p43 = por %p41, %p42
      %p44 = scmp.ne.s32.totalorder %s30, %s31
      %p45 = scmp.eq.s32.totalorder %s23, 3
      %p46 = por %p44, %p45
      %p48 = scmp.ne.s32.totalorder %s31, %s47
      %p49 = scmp.eq.s32.totalorder %s23, 0
      %p50 = por %p48, %p49
      %s51 = ssub.s32 %s17, %s24
      %p52 = scmp.eq.s32.totalorder %s51, 0
      %s54 = sadd.s32 %s53, 1
      %s55 = scalar_select %p52, %s53, %s54
      %p58 = pneg %p52
      %p59 = scmp.eq.s32.totalorder %s17, 3
      %p60 = por %p58, %p59
      %p61 = scmp.ne.s32.totalorder %s53, %s56
      %p62 = scmp.eq.s32.totalorder %s17, 0
      %p63 = por %p61, %p62
      %p64 = scmp.ne.s32.totalorder %s53, %s56
      %p65 = scmp.eq.s32.totalorder %s22, 3
      %p66 = por %p64, %p65
      %p67 = scmp.ne.s32.totalorder %s56, %s57
      %p68 = scmp.eq.s32.totalorder %s22, 0
      %p69 = por %p67, %p68
      %p70 = scmp.ne.s32.totalorder %s56, %s57
      %p71 = scmp.eq.s32.totalorder %s23, 3
      %p72 = por %p70, %p71
      %p74 = scmp.ne.s32.totalorder %s57, %s73
      %p75 = scmp.eq.s32.totalorder %s23, 0
      %p76 = por %p74, %p75
      %s78 = sadd.s32 %s77, 1
      %p81 = scmp.eq.s32.totalorder %s17, 3
      %p82 = scmp.ne.s32.totalorder %s77, %s79
      %p83 = scmp.eq.s32.totalorder %s17, 0
      %p84 = por %p82, %p83
      %p85 = scmp.ne.s32.totalorder %s77, %s79
      %p86 = scmp.eq.s32.totalorder %s22, 3
      %p87 = por %p85, %p86
      %p88 = scmp.ne.s32.totalorder %s79, %s80
      %p89 = scmp.eq.s32.totalorder %s22, 0
      %p90 = por %p88, %p89
      %p91 = scmp.ne.s32.totalorder %s79, %s80
      %p92 = scmp.eq.s32.totalorder %s23, 3
      %p93 = por %p91, %p92
      %p95 = scmp.ne.s32.totalorder %s80, %s94
      %p96 = scmp.eq.s32.totalorder %s23, 0
      %p97 = por %p95, %p96
      %s99 = sadd.s32 %s98, 1
      %p102 = scmp.eq.s32.totalorder %s17, 3
      %p103 = scmp.ne.s32.totalorder %s98, %s100
      %p104 = scmp.eq.s32.totalorder %s17, 0
      %p105 = por %p103, %p104
      %p106 = scmp.ne.s32.totalorder %s98, %s100
      %p107 = scmp.eq.s32.totalorder %s22, 3
      %p108 = por %p106, %p107
      %p109 = scmp.ne.s32.totalorder %s100, %s101
      %p110 = scmp.eq.s32.totalorder %s22, 0
      %p111 = por %p109, %p110
      %p112 = scmp.ne.s32.totalorder %s100, %s101
      %p113 = scmp.eq.s32.totalorder %s23, 3
      %p114 = por %p112, %p113
      %p116 = scmp.ne.s32.totalorder %s101, %s115
      %p117 = scmp.eq.s32.totalorder %s23, 0
      %p118 = por %p116, %p117
      %p119 = scmp.le.s32.totalorder 1, %s17
      %p120 = scmp.lt.s32.totalorder %s17, 5
      %p121 = pnand %p119, %p120
      %p122 = pneg %p121
      // Predicated region
      $region9: #{lovasz_softmax.3} parent=5 // pred_check
        _
      $region10: #{lovasz_softmax.3} parent=5 // pred_check_branch
        %124 = sbr.rel (%p121) target = $region12
      $region11: #{lovasz_softmax.3} parent=5 // pred_region
        %s125 = ssub.s32 %s17, 1
        // Predicated region
        $region13: #{lovasz_softmax.3} parent=11 // pred_check
          %p126 = pneg %p90
        $region14: #{lovasz_softmax.3} parent=11 // pred_check_branch
          %128 = sbr.rel (%p126) target = $region16
        $region15: #{lovasz_softmax.3} parent=11 // pred_region
          _
        $region16: #{lovasz_softmax.3} parent=11 // pred_fallthru
          _
      $region12: #{lovasz_softmax.3} parent=5 // pred_fallthru
        _
      %p129 = scmp.lt.s32.totalorder %s17, 4
      // Predicated region
      $region17: #{lovasz_softmax.3} parent=5 // pred_check
        %p130 = pneg %p129
      $region18: #{lovasz_softmax.3} parent=5 // pred_check_branch
        %132 = sbr.rel (%p130) target = $region20
      $region19: #{lovasz_softmax.3} parent=5 // pred_region
        // Predicated region
        $region21: #{lovasz_softmax.3} parent=19 // pred_check
          %p133 = pneg %p37
        $region22: #{lovasz_softmax.3} parent=19 // pred_check_branch
          %135 = sbr.rel (%p133) target = $region24
        $region23: #{lovasz_softmax.3} parent=19 // pred_region
          %p136 = scmp.lt.s32.totalorder %s17, 3
          %s137 = scalar_select %p136, %s17, 3
          %s138 = smul.addr %s137, 4
          %s139 = scalar_lea.vmem %s1, %s138
        $region24: #{lovasz_softmax.3} parent=19 // pred_fallthru
          _
        // Predicated region
        $region25: #{lovasz_softmax.3} parent=19 // pred_check
          %p140 = pneg %p63
        $region26: #{lovasz_softmax.3} parent=19 // pred_check_branch
          %142 = sbr.rel (%p140) target = $region28
        $region27: #{lovasz_softmax.3} parent=19 // pred_region
          %p143 = scmp.lt.s32.totalorder %s17, 3
          %s144 = scalar_select %p143, %s17, 3
          %s145 = smul.addr %s144, 2
          %s146 = scalar_lea.vmem %s2, %s145
        $region28: #{lovasz_softmax.3} parent=19 // pred_fallthru
          _
      $region20: #{lovasz_softmax.3} parent=5 // pred_fallthru
        _
      %p147 = scmp.le.s32.totalorder 1, %s17
      %p148 = scmp.lt.s32.totalorder %s17, 5
      %p149 = pnand %p147, %p148
      %p150 = pneg %p149
      // Predicated region
      $region29: #{lovasz_softmax.3} parent=5 // pred_check
        _
      $region30: #{lovasz_softmax.3} parent=5 // pred_check_branch
        %152 = sbr.rel (%p149) target = $region32
      $region31: #{lovasz_softmax.3} parent=5 // pred_region
        %s153 = ssub.s32 %s17, 1
        %p154 = scmp.lt.s32.totalorder %s22, 3
        %s155 = scalar_select %p154, %s22, 3
        %s156 = smul.addr %s155, 4
        %s157 = scalar_lea.vmem %s1, %s156
        %p158 = pneg %p43
        %p159 = pneg %p40
        %p160 = scmp.lt.s32.totalorder %s22, 3
        %s161 = scalar_select %p160, %s22, 3
        %s162 = smul.addr %s161, 2
        %s163 = scalar_lea.vmem %s2, %s162
        %p164 = pneg %p69
        %p165 = pneg %p66
        %p166 = pneg %p90
        %p167 = pneg %p87
        %p168 = pneg %p111
        %p169 = pneg %p108
        %p170 = scmp.lt.s32.totalorder %s22, 3
        %s171 = scalar_select %p170, %s22, 3
        %s172 = smul.addr %s171, 4
        %s173 = scalar_lea.vmem %s1, %s172
        %p174 = scmp.lt.s32.totalorder %s22, 3
        %s175 = scalar_select %p174, %s22, 3
        %s176 = smul.addr %s175, 2
        %s177 = scalar_lea.vmem %s2, %s176
        %p178 = scmp.eq.s32.totalorder %s22, 0
        // Predicated region
        $region33: #{lovasz_softmax.3} parent=31 // pred_check
          %p179 = pneg %p178
        $region34: #{lovasz_softmax.3} parent=31 // pred_check_branch
          %181 = sbr.rel (%p179) target = $region36
        $region35: #{lovasz_softmax.3} parent=31 // pred_region
          %vm182 = vcmask 0
          %183 = vst.msk [vmem:[#allocation6] sm:$0x1] %vm182, 0.0
          %vm184 = vcmask 3072
          %185 = vst.msk [vmem:[#allocation2] sm:$0xf] %vm184, 0.0
          %186 = vst.msk [vmem:[#allocation3] sm:$0xf] %vm184, 0.0
        $region36: #{lovasz_softmax.3} parent=31 // pred_fallthru
          _
        %s187 = sld [smem:[#allocation5 + %s22]]
        %p188 = scmp.ne.s32.totalorder %s187, 0
        // Predicated region
        $region37: #{lovasz_softmax.3} parent=31 // pred_check
          %p189 = pneg %p188
        $region38: #{lovasz_softmax.3} parent=31 // pred_check_branch
          %191 = sbr.rel (%p189) target = $region40
        $region39: #{lovasz_softmax.3} parent=31 // pred_region
          %v192 = vld [vmem:[%s173] sm:$0xf]
          %v193 = vld [vmem:[%s177] sm:$0x3]
          %v194 = vunpack.c.l.bf16 %v193
          %v195 = vld [vmem:[%s3] sm:$0xf]
          %v196 = vlaneseq
          %v197 = vand.u32 %v196, 127
          %198 = vrot.lane.b32.xlu0 %v194, 1
          %v199 = vpop.permute.xlu0 %198
          %vm200 = vcmp.ge.s32.totalorder %v197, 1
          %v201 = vsel %vm200, %v199, 0.0
          %v202 = vadd.f32 %v194, %v201
          %203 = vrot.lane.b32.xlu0 %v202, 2
          %v204 = vpop.permute.xlu0 %203
          %vm205 = vcmp.ge.s32.totalorder %v197, 2
          %v206 = vsel %vm205, %v204, 0.0
          %v207 = vadd.f32 %v202, %v206
          %208 = vrot.lane.b32.xlu0 %v207, 4
          %v209 = vpop.permute.xlu0 %208
          %vm210 = vcmp.ge.s32.totalorder %v197, 4
          %v211 = vsel %vm210, %v209, 0.0
          %v212 = vadd.f32 %v207, %v211
          %213 = vrot.lane.b32.xlu0 %v212, 8
          %v214 = vpop.permute.xlu0 %213
          %vm215 = vcmp.ge.s32.totalorder %v197, 8
          %v216 = vsel %vm215, %v214, 0.0
          %v217 = vadd.f32 %v212, %v216
          %218 = vrot.lane.b32.xlu0 %v217, 16
          %v219 = vpop.permute.xlu0 %218
          %vm220 = vcmp.ge.s32.totalorder %v197, 16
          %v221 = vsel %vm220, %v219, 0.0
          %v222 = vadd.f32 %v217, %v221
          %223 = vrot.lane.b32.xlu0 %v222, 32
          %v224 = vpop.permute.xlu0 %223
          %vm225 = vcmp.ge.s32.totalorder %v197, 32
          %v226 = vsel %vm225, %v224, 0.0
          %v227 = vadd.f32 %v222, %v226
          %228 = vrot.lane.b32.xlu0 %v227, 64
          %v229 = vpop.permute.xlu0 %228
          %vm230 = vcmp.ge.s32.totalorder %v197, 64
          %v231 = vsel %vm230, %v229, 0.0
          %v232 = vadd.f32 %v227, %v231
          %v233 = vld [vmem:[#allocation2] sm:$0xf]
          %235 = vset.pattern.permute.xlu0 0
          %236 = vperm.xlu0 %235, %v233
          %v237 = vpop.permute.xlu0 %236
          %v239 = vadd.f32 %v232, %v237
          %s240 = smul.u32 %s22, 128
          %s241 = sadd.s32 %s240, 1
          %v242 = vstv %s241
          %v243 = vadd.s32 %v197, %v242
          %v244 = vcvt.s32.f32 %v243
          %246 = vset.pattern.permute.xlu0 0
          %247 = vperm.xlu0 %246, %v195
          %v248 = vpop.permute.xlu0 %247
          %v250 = vadd.f32 %v248, %v244
          %v251 = vsub.f32 %v250, %v239
          %v252 = vsub.f32 %v248, %v239
          %v253 = vrcp.pop %v251
          %v254 = vmul.f32 %v252, %v253
          %v255 = vsub.f32 1.0, %v254
          %vm256 = vcmp.eq.s32.totalorder %v197, 0
          %v257 = vld [vmem:[#allocation3] sm:$0xf]
          %258 = vrot.lane.b32.xlu0 %v255, 1
          %v259 = vpop.permute.xlu0 %258
          %261 = vset.pattern.permute.xlu0 0
          %262 = vperm.xlu0 %261, %v257
          %v263 = vpop.permute.xlu0 %262
          %v265 = vsel %vm256, %v263, %v259
          %v266 = vsub.f32 %v255, %v265
          %v267 = vmul.f32 %v192, %v266
          %vm268 = vcmask 1043456
          %v269 = vsel %vm268, %v267, 0.0
          %270 = vadd.xlane.f32.xlu0 %v269
          %v271 = vpop.xlane.xlu0 %270
          %v272 = vld [vmem:[#allocation6] sm:$0x1]
          %v273 = vsel %vm268, %v271, 0.0
          %v274 = vrot.slane %v273, 4
          %v275 = vadd.f32 %v273, %v274
          %v276 = vrot.slane %v275, 2
          %v277 = vadd.f32 %v275, %v276
          %v278 = vrot.slane %v277, 1
          %v279 = vadd.f32 %v277, %v278
          %v280 = vadd.f32 %v272, %v279
          %vm281 = vcmask 0
          %282 = vst.msk [vmem:[#allocation6] sm:$0x1] %vm281, %v280
          %284 = vrot.lane.b32.xlu0 %v239, 1
          %v285 = vpop.permute.xlu0 %284
          %vm287 = vcmask 3072
          %288 = vst.msk [vmem:[#allocation2] sm:$0xf] %vm287, %v285
          %290 = vrot.lane.b32.xlu0 %v255, 1
          %v291 = vpop.permute.xlu0 %290
          %293 = vst.msk [vmem:[#allocation3] sm:$0xf] %vm287, %v291
        $region40: #{lovasz_softmax.3} parent=31 // pred_fallthru
          _
        %p294 = scmp.eq.s32.totalorder %s22, 3
        // Predicated region
        $region41: #{lovasz_softmax.3} parent=31 // pred_check
          %p295 = pneg %p294
        $region42: #{lovasz_softmax.3} parent=31 // pred_check_branch
          %297 = sbr.rel (%p295) target = $region44
        $region43: #{lovasz_softmax.3} parent=31 // pred_region
          %v298 = vld [vmem:[#allocation6] sm:$0x1]
          %v299 = vmul.f32 %v298, -0.25
          %vm300 = vcmask 0
          %301 = vst.msk [vmem:[#allocation6] sm:$0x1] %vm300, %v299
        $region44: #{lovasz_softmax.3} parent=31 // pred_fallthru
          _
        // Predicated region
        $region45: #{lovasz_softmax.3} parent=31 // pred_check
          %p302 = pneg %p108
        $region46: #{lovasz_softmax.3} parent=31 // pred_check_branch
          %304 = sbr.rel (%p302) target = $region48
        $region47: #{lovasz_softmax.3} parent=31 // pred_region
          %s306 = ssub.s32 16, 16
          %307 = vsyncadd [#allocation7], %s306
          %s309 = sshll.u32 [#allocation6], 4
          %s310 = int_to_ptr.vmem [resolvable:$true] %s309
          %312 = dma.vmem_to_hbm [thread:$0]  %s310, 16, %s4, [#allocation7]
        $region48: #{lovasz_softmax.3} parent=31 // pred_fallthru
          _
        // Predicated region
        $region49: #{lovasz_softmax.3} parent=31 // pred_check
          %p313 = pneg %p108
        $region50: #{lovasz_softmax.3} parent=31 // pred_check_branch
          %315 = sbr.rel (%p313) target = $region52
        $region51: #{lovasz_softmax.3} parent=31 // pred_region
          %316 = dma.done [#allocation7], 16
        $region52: #{lovasz_softmax.3} parent=31 // pred_fallthru
          _
      $region32: #{lovasz_softmax.3} parent=5 // pred_fallthru
        _
      %p317 = scmp.le.s32.totalorder 2, %s17
      // Predicated region
      $region53: #{lovasz_softmax.3} parent=5 // pred_check
        %p318 = pneg %p317
      $region54: #{lovasz_softmax.3} parent=5 // pred_check_branch
        %320 = sbr.rel (%p318) target = $region56
      $region55: #{lovasz_softmax.3} parent=5 // pred_region
        %s321 = ssub.s32 %s17, 2
      $region56: #{lovasz_softmax.3} parent=5 // pred_fallthru
        _
    $region6: #{lovasz_softmax.3} parent=1 // loop_footer
      %s21 = sadd.s32 1, %s17
    $region7: #{lovasz_softmax.3} parent=1 // loop_footer_branch
      %16 = sbr.rel target = $region3
    $region8: #{lovasz_softmax.3} parent=1 // loop_exit
      _
    %322 = vsyncpa [#allocation7], 1
    %s323 = scalar_lea.sflag [#allocation7], 1
    %324 = vsyncpa %s323, 1

</llo_original>
